<compile_context>
chip_gen: v7x
topology: tpu7x:2x2x1
jax: 0.10.0
libtpu: 0.0.40
codegen_flags: <defaults>
</compile_context>

<pallas_src>
import functools
import math

import numpy as np

import jax
import jax.numpy as jnp
from jax.experimental import pallas as pl
from jax.experimental.pallas import tpu as pltpu


def _round_up(x, m):
    return ((x + m - 1) // m) * m


def nps_kernel(patch_ref, out_ref, acc_ref, *,
               colors_adj, n_valid, rows, num_channels, padded):
    """One grid step: (C, rows, 128) pixel block -> (8, 128) running partials."""
    s = pl.program_id(0)          # parallel (core) axis
    t = pl.program_id(1)          # reduction axis over pixel tiles
    nt = pl.num_programs(1)

    @pl.when(t == 0)
    def _():
        acc_ref[...] = jnp.zeros_like(acc_ref)

    # Dense (rows, 128) channel planes, cast to f32 for compute.
    chans = [patch_ref[c].astype(jnp.float32) for c in range(num_channels)]

    # Running min over printable colors of the squared distance (VPU only).
    dmin2 = None
    for color in colors_adj:                      # unrolled, P is tiny
        dist2 = None
        for c in range(num_channels):             # unrolled, C = 3
            d = chans[c] - color[c]               # +1e-6 folded into color
            sq = d * d
            dist2 = sq if dist2 is None else dist2 + sq
        dmin2 = dist2 if dmin2 is None else jnp.minimum(dmin2, dist2)

    # Single sqrt per pixel (min-before-sqrt is exact: sqrt is monotone).
    dmin = jnp.sqrt(dmin2 + 1e-6)                 # (rows, 128)

    if padded:
        # Mask out padded pixels (they would otherwise contribute to the sum).
        base = (s * nt + t) * (rows * 128)
        ridx = jax.lax.broadcasted_iota(jnp.int32, (rows, 128), 0)
        lidx = jax.lax.broadcasted_iota(jnp.int32, (rows, 128), 1)
        idx = base + ridx * 128 + lidx
        dmin = jnp.where(idx < n_valid, dmin, 0.0)

    # Fold (rows, 128) -> (8, 128) with pure elementwise vreg adds.
    partial = jnp.sum(dmin.reshape(rows // 8, 8, 128), axis=0)
    acc_ref[...] += partial

    @pl.when(t == nt - 1)
    def _():
        out_ref[...] = acc_ref[...]


def nps_loss_pallas(adv_patch, colors, *, max_rows=512):
    """adv_patch: (C, H, W) float, colors: (P, C) printability triplets -> scalar f32."""
    C, H, W = adv_patch.shape
    N = H * W
    n128 = -(-N // 128)                                   # 128-pixel rows needed

    # Megacore split: 2-way on the parallel axis when there is enough work.
    S = 2 if n128 >= 16 else 1

    # Row alignment: 8 for 32-bit dtypes, 16 for 16-bit (bf16), etc.
    itemsize = jnp.dtype(adv_patch.dtype).itemsize
    row_align = max(8, 32 // max(itemsize, 1))
    rows = min(_round_up(max_rows, row_align),
               _round_up(-(-n128 // S), row_align))
    tiles_per_split = -(-n128 // (S * rows))
    r_total = S * tiles_per_split * rows
    n_pad = r_total * 128
    padded = (n_pad != N)

    # Printability colors as compile-time constants, +1e-6 bias folded in.
    colors_np = np.asarray(colors, dtype=np.float32)
    P = colors_np.shape[0]
    colors_adj = tuple(
        tuple(float(np.float32(colors_np[p, c]) - np.float32(1e-6)) for c in range(C))
        for p in range(P))

    # Pixel-dense slab: (C, r_total, 128) in the patch's native dtype.
    patch = adv_patch
    if not jnp.issubdtype(patch.dtype, jnp.floating):
        patch = patch.astype(jnp.float32)
    patch = patch.reshape(C, N)
    if padded:
        patch = jnp.pad(patch, ((0, 0), (0, n_pad - N)))
    patch3 = patch.reshape(C, r_total, 128)

    kernel = functools.partial(
        nps_kernel, colors_adj=colors_adj, n_valid=N, rows=rows,
        num_channels=C, padded=padded)

    partials = pl.pallas_call(
        kernel,
        out_shape=jax.ShapeDtypeStruct((S, 8, 128), jnp.float32),
        grid_spec=pltpu.PrefetchScalarGridSpec(
            num_scalar_prefetch=0,
            grid=(S, tiles_per_split),
            in_specs=[
                pl.BlockSpec((C, rows, 128),
                             lambda s, t: (0, s * tiles_per_split + t, 0)),
            ],
            out_specs=pl.BlockSpec((None, 8, 128), lambda s, t: (s, 0, 0)),
            scratch_shapes=[pltpu.VMEM((8, 128), jnp.float32)],
        ),
        compiler_params=pltpu.CompilerParams(
            dimension_semantics=("parallel", "arbitrary")),
    )(patch3)

    return jnp.sum(partials) / float(C * H * W)


def nps_loss_ref(adv_patch, colors):
    """Pure-JAX reference mirroring the PyTorch forward exactly."""
    pa = colors[:, :, None, None]                       # (P, C, 1, 1), spatially const
    cd = adv_patch[None, :, :, :].astype(jnp.float32) - pa + 1e-6
    cd = cd ** 2
    cd = jnp.sum(cd, axis=1) + 1e-6
    cd = jnp.sqrt(cd)
    cd_min = jnp.min(cd, axis=0)
    return jnp.sum(cd_min) / adv_patch.size


if __name__ == "__main__":
    key = jax.random.PRNGKey(0)
    k1, k2 = jax.random.split(key)

    # Deterministic synthetic printability triplets (normally read from a csv).
    colors = jnp.array(
        [[0.10, 0.10, 0.10],
         [0.90, 0.90, 0.90],
         [0.80, 0.10, 0.10],
         [0.10, 0.80, 0.10],
         [0.10, 0.10, 0.80],
         [0.70, 0.70, 0.10],
         [0.70, 0.10, 0.70],
         [0.10, 0.70, 0.70]], dtype=jnp.float32)

    # Small adversarial patch, (C=3, H=16, W=16), values in [0, 1].
    adv_patch = jax.random.uniform(k1, (3, 16, 16), dtype=jnp.float32)
    out = jax.block_until_ready(nps_loss_pallas(adv_patch, colors))
    ref = nps_loss_ref(adv_patch, colors)
    assert jnp.allclose(out, ref, rtol=1e-5, atol=1e-6), (out, ref)

    # Second shape whose pixel count is NOT a multiple of 128 (exercises masking).
    adv_patch2 = jax.random.uniform(k2, (3, 23, 41), dtype=jnp.float32)
    out2 = jax.block_until_ready(nps_loss_pallas(adv_patch2, colors))
    ref2 = nps_loss_ref(adv_patch2, colors)
    assert jnp.allclose(out2, ref2, rtol=1e-5, atol=1e-6), (out2, ref2)

    print("KERNEL_OK")
</pallas_src>

<mosaic_0001>
module attributes {stable_mosaic.version = 11 : i64} {
  func.func @nps_kernel(%arg0: i32, %arg1: i32, %arg2: memref<3x8x128xf32, #tpu.memory_space<vmem>>, %arg3: memref<1x8x128xf32, #tpu.memory_space<vmem>>, %arg4: memref<8x128xf32, #tpu.memory_space<vmem>>) attributes {dimension_semantics = [#tpu.dimension_semantics<parallel>, #tpu.dimension_semantics<arbitrary>], iteration_bounds = array<i64: 1, 1>, scalar_prefetch = 0 : i64, scratch_operands = 1 : i64, tpu.core_type = #tpu.core_type<tc>, window_params = [{transform_indices = @transform_0, window_bounds = array<i64: 3, 8, 128>}, {transform_indices = @transform_1, window_bounds = array<i64: 1, 8, 128>}]} {
    %c0_i32 = arith.constant 0 : i32
    %0 = arith.cmpi eq, %arg1, %c0_i32 : i32
    %1 = arith.extui %0 : i1 to i32
    %c0_i32_0 = arith.constant 0 : i32
    %2 = arith.cmpi ne, %1, %c0_i32_0 : i32
    scf.if %2 {
      %cst_39 = arith.constant 0.000000e+00 : f32
      %129 = vector.broadcast %cst_39 : f32 to vector<8x128xf32>
      %c0_40 = arith.constant 0 : index
      %c0_41 = arith.constant 0 : index
      %130 = vector.load %arg4[%c0_40, %c0_41] : memref<8x128xf32, #tpu.memory_space<vmem>>, vector<8x128xf32>
      tpu.vector_store %arg4[%c0_40, %c0_41], %129 {strides = array<i32>} : memref<8x128xf32, #tpu.memory_space<vmem>>, vector<8x128xf32>,
    } else {
    }
    %c0 = arith.constant 0 : index
    %c0_1 = arith.constant 0 : index
    %c0_2 = arith.constant 0 : index
    %3 = vector.load %arg2[%c0, %c0_1, %c0_2] : memref<3x8x128xf32, #tpu.memory_space<vmem>>, vector<1x8x128xf32>
    %4 = vector.shape_cast %3 : vector<1x8x128xf32> to vector<8x128xf32>
    %c1 = arith.constant 1 : index
    %c0_3 = arith.constant 0 : index
    %c0_4 = arith.constant 0 : index
    %5 = vector.load %arg2[%c1, %c0_3, %c0_4] : memref<3x8x128xf32, #tpu.memory_space<vmem>>, vector<1x8x128xf32>
    %6 = vector.shape_cast %5 : vector<1x8x128xf32> to vector<8x128xf32>
    %c2 = arith.constant 2 : index
    %c0_5 = arith.constant 0 : index
    %c0_6 = arith.constant 0 : index
    %7 = vector.load %arg2[%c2, %c0_5, %c0_6] : memref<3x8x128xf32, #tpu.memory_space<vmem>>, vector<1x8x128xf32>
    %8 = vector.shape_cast %7 : vector<1x8x128xf32> to vector<8x128xf32>
    %cst = arith.constant 9.999900e-02 : f32
    %9 = vector.broadcast %cst : f32 to vector<8x128xf32>
    %10 = arith.subf %4, %9 : vector<8x128xf32>
    %11 = arith.mulf %10, %10 : vector<8x128xf32>
    %cst_7 = arith.constant 9.999900e-02 : f32
    %12 = vector.broadcast %cst_7 : f32 to vector<8x128xf32>
    %13 = arith.subf %6, %12 : vector<8x128xf32>
    %14 = arith.mulf %13, %13 : vector<8x128xf32>
    %15 = arith.addf %11, %14 : vector<8x128xf32>
    %cst_8 = arith.constant 9.999900e-02 : f32
    %16 = vector.broadcast %cst_8 : f32 to vector<8x128xf32>
    %17 = arith.subf %8, %16 : vector<8x128xf32>
    %18 = arith.mulf %17, %17 : vector<8x128xf32>
    %19 = arith.addf %15, %18 : vector<8x128xf32>
    %cst_9 = arith.constant 0.899998962 : f32
    %20 = vector.broadcast %cst_9 : f32 to vector<8x128xf32>
    %21 = arith.subf %4, %20 : vector<8x128xf32>
    %22 = arith.mulf %21, %21 : vector<8x128xf32>
    %cst_10 = arith.constant 0.899998962 : f32
    %23 = vector.broadcast %cst_10 : f32 to vector<8x128xf32>
    %24 = arith.subf %6, %23 : vector<8x128xf32>
    %25 = arith.mulf %24, %24 : vector<8x128xf32>
    %26 = arith.addf %22, %25 : vector<8x128xf32>
    %cst_11 = arith.constant 0.899998962 : f32
    %27 = vector.broadcast %cst_11 : f32 to vector<8x128xf32>
    %28 = arith.subf %8, %27 : vector<8x128xf32>
    %29 = arith.mulf %28, %28 : vector<8x128xf32>
    %30 = arith.addf %26, %29 : vector<8x128xf32>
    %31 = arith.minimumf %19, %30 : vector<8x128xf32>
    %cst_12 = arith.constant 7.999990e-01 : f32
    %32 = vector.broadcast %cst_12 : f32 to vector<8x128xf32>
    %33 = arith.subf %4, %32 : vector<8x128xf32>
    %34 = arith.mulf %33, %33 : vector<8x128xf32>
    %cst_13 = arith.constant 9.999900e-02 : f32
    %35 = vector.broadcast %cst_13 : f32 to vector<8x128xf32>
    %36 = arith.subf %6, %35 : vector<8x128xf32>
    %37 = arith.mulf %36, %36 : vector<8x128xf32>
    %38 = arith.addf %34, %37 : vector<8x128xf32>
    %cst_14 = arith.constant 9.999900e-02 : f32
    %39 = vector.broadcast %cst_14 : f32 to vector<8x128xf32>
    %40 = arith.subf %8, %39 : vector<8x128xf32>
    %41 = arith.mulf %40, %40 : vector<8x128xf32>
    %42 = arith.addf %38, %41 : vector<8x128xf32>
    %43 = arith.minimumf %31, %42 : vector<8x128xf32>
    %cst_15 = arith.constant 9.999900e-02 : f32
    %44 = vector.broadcast %cst_15 : f32 to vector<8x128xf32>
    %45 = arith.subf %4, %44 : vector<8x128xf32>
    %46 = arith.mulf %45, %45 : vector<8x128xf32>
    %cst_16 = arith.constant 7.999990e-01 : f32
    %47 = vector.broadcast %cst_16 : f32 to vector<8x128xf32>
    %48 = arith.subf %6, %47 : vector<8x128xf32>
    %49 = arith.mulf %48, %48 : vector<8x128xf32>
    %50 = arith.addf %46, %49 : vector<8x128xf32>
    %cst_17 = arith.constant 9.999900e-02 : f32
    %51 = vector.broadcast %cst_17 : f32 to vector<8x128xf32>
    %52 = arith.subf %8, %51 : vector<8x128xf32>
    %53 = arith.mulf %52, %52 : vector<8x128xf32>
    %54 = arith.addf %50, %53 : vector<8x128xf32>
    %55 = arith.minimumf %43, %54 : vector<8x128xf32>
    %cst_18 = arith.constant 9.999900e-02 : f32
    %56 = vector.broadcast %cst_18 : f32 to vector<8x128xf32>
    %57 = arith.subf %4, %56 : vector<8x128xf32>
    %58 = arith.mulf %57, %57 : vector<8x128xf32>
    %cst_19 = arith.constant 9.999900e-02 : f32
    %59 = vector.broadcast %cst_19 : f32 to vector<8x128xf32>
    %60 = arith.subf %6, %59 : vector<8x128xf32>
    %61 = arith.mulf %60, %60 : vector<8x128xf32>
    %62 = arith.addf %58, %61 : vector<8x128xf32>
    %cst_20 = arith.constant 7.999990e-01 : f32
    %63 = vector.broadcast %cst_20 : f32 to vector<8x128xf32>
    %64 = arith.subf %8, %63 : vector<8x128xf32>
    %65 = arith.mulf %64, %64 : vector<8x128xf32>
    %66 = arith.addf %62, %65 : vector<8x128xf32>
    %67 = arith.minimumf %55, %66 : vector<8x128xf32>
    %cst_21 = arith.constant 6.999990e-01 : f32
    %68 = vector.broadcast %cst_21 : f32 to vector<8x128xf32>
    %69 = arith.subf %4, %68 : vector<8x128xf32>
    %70 = arith.mulf %69, %69 : vector<8x128xf32>
    %cst_22 = arith.constant 6.999990e-01 : f32
    %71 = vector.broadcast %cst_22 : f32 to vector<8x128xf32>
    %72 = arith.subf %6, %71 : vector<8x128xf32>
    %73 = arith.mulf %72, %72 : vector<8x128xf32>
    %74 = arith.addf %70, %73 : vector<8x128xf32>
    %cst_23 = arith.constant 9.999900e-02 : f32
    %75 = vector.broadcast %cst_23 : f32 to vector<8x128xf32>
    %76 = arith.subf %8, %75 : vector<8x128xf32>
    %77 = arith.mulf %76, %76 : vector<8x128xf32>
    %78 = arith.addf %74, %77 : vector<8x128xf32>
    %79 = arith.minimumf %67, %78 : vector<8x128xf32>
    %cst_24 = arith.constant 6.999990e-01 : f32
    %80 = vector.broadcast %cst_24 : f32 to vector<8x128xf32>
    %81 = arith.subf %4, %80 : vector<8x128xf32>
    %82 = arith.mulf %81, %81 : vector<8x128xf32>
    %cst_25 = arith.constant 9.999900e-02 : f32
    %83 = vector.broadcast %cst_25 : f32 to vector<8x128xf32>
    %84 = arith.subf %6, %83 : vector<8x128xf32>
    %85 = arith.mulf %84, %84 : vector<8x128xf32>
    %86 = arith.addf %82, %85 : vector<8x128xf32>
    %cst_26 = arith.constant 6.999990e-01 : f32
    %87 = vector.broadcast %cst_26 : f32 to vector<8x128xf32>
    %88 = arith.subf %8, %87 : vector<8x128xf32>
    %89 = arith.mulf %88, %88 : vector<8x128xf32>
    %90 = arith.addf %86, %89 : vector<8x128xf32>
    %91 = arith.minimumf %79, %90 : vector<8x128xf32>
    %cst_27 = arith.constant 9.999900e-02 : f32
    %92 = vector.broadcast %cst_27 : f32 to vector<8x128xf32>
    %93 = arith.subf %4, %92 : vector<8x128xf32>
    %94 = arith.mulf %93, %93 : vector<8x128xf32>
    %cst_28 = arith.constant 6.999990e-01 : f32
    %95 = vector.broadcast %cst_28 : f32 to vector<8x128xf32>
    %96 = arith.subf %6, %95 : vector<8x128xf32>
    %97 = arith.mulf %96, %96 : vector<8x128xf32>
    %98 = arith.addf %94, %97 : vector<8x128xf32>
    %cst_29 = arith.constant 6.999990e-01 : f32
    %99 = vector.broadcast %cst_29 : f32 to vector<8x128xf32>
    %100 = arith.subf %8, %99 : vector<8x128xf32>
    %101 = arith.mulf %100, %100 : vector<8x128xf32>
    %102 = arith.addf %98, %101 : vector<8x128xf32>
    %103 = arith.minimumf %91, %102 : vector<8x128xf32>
    %cst_30 = arith.constant 9.99999997E-7 : f32
    %104 = vector.broadcast %cst_30 : f32 to vector<8x128xf32>
    %105 = arith.addf %103, %104 : vector<8x128xf32>
    %106 = math.sqrt %105 : vector<8x128xf32>
    %c1_i32 = arith.constant 1 : i32
    %107 = arith.muli %arg0, %c1_i32 : i32
    %108 = arith.addi %107, %arg1 : i32
    %c1024_i32 = arith.constant 1024 : i32
    %109 = arith.muli %108, %c1024_i32 : i32
    %110 = tpu.iota {dimensions = array<i32: 0>} : vector<8x128xi32>
    %111 = tpu.iota {dimensions = array<i32: 1>} : vector<8x128xi32>
    %c128_i32 = arith.constant 128 : i32
    %112 = vector.broadcast %c128_i32 : i32 to vector<8x128xi32>
    %113 = arith.muli %110, %112 : vector<8x128xi32>
    %114 = vector.broadcast %109 : i32 to vector<8x128xi32>
    %115 = arith.addi %114, %113 : vector<8x128xi32>
    %116 = arith.addi %115, %111 : vector<8x128xi32>
    %c256_i32 = arith.constant 256 : i32
    %117 = vector.broadcast %c256_i32 : i32 to vector<8x128xi32>
    %118 = arith.cmpi slt, %116, %117 : vector<8x128xi32>
    %cst_31 = arith.constant 0.000000e+00 : f32
    %119 = vector.broadcast %cst_31 : f32 to vector<8x128xf32>
    %120 = arith.select %118, %106, %119 : vector<8x128xi1>, vector<8x128xf32>
    %121 = vector.shape_cast %120 : vector<8x128xf32> to vector<1x8x128xf32>
    %cst_32 = arith.constant dense<0.000000e+00> : vector<8x128xf32>
    %122 = vector.multi_reduction <add>, %121, %cst_32 [0] : vector<1x8x128xf32> to vector<8x128xf32>
    %c0_33 = arith.constant 0 : index
    %c0_34 = arith.constant 0 : index
    %123 = vector.load %arg4[%c0_33, %c0_34] : memref<8x128xf32, #tpu.memory_space<vmem>>, vector<8x128xf32>
    %124 = arith.addf %123, %122 : vector<8x128xf32>
    %c0_35 = arith.constant 0 : index
    %c0_36 = arith.constant 0 : index
    %125 = vector.load %arg4[%c0_35, %c0_36] : memref<8x128xf32, #tpu.memory_space<vmem>>, vector<8x128xf32>
    tpu.vector_store %arg4[%c0_35, %c0_36], %124 {strides = array<i32>} : memref<8x128xf32, #tpu.memory_space<vmem>>, vector<8x128xf32>,
    %c0_i32_37 = arith.constant 0 : i32
    %126 = arith.cmpi eq, %arg1, %c0_i32_37 : i32
    %127 = arith.extui %126 : i1 to i32
    %c0_i32_38 = arith.constant 0 : i32
    %128 = arith.cmpi ne, %127, %c0_i32_38 : i32
    scf.if %128 {
      %c0_39 = arith.constant 0 : index
      %c0_40 = arith.constant 0 : index
      %129 = vector.load %arg4[%c0_39, %c0_40] : memref<8x128xf32, #tpu.memory_space<vmem>>, vector<8x128xf32>
      %c0_41 = arith.constant 0 : index
      %c0_42 = arith.constant 0 : index
      %c0_43 = arith.constant 0 : index
      %130 = vector.load %arg3[%c0_41, %c0_42, %c0_43] : memref<1x8x128xf32, #tpu.memory_space<vmem>>, vector<1x8x128xf32>
      %131 = vector.shape_cast %130 : vector<1x8x128xf32> to vector<8x128xf32>
      %132 = vector.shape_cast %129 : vector<8x128xf32> to vector<1x8x128xf32>
      tpu.vector_store %arg3[%c0_41, %c0_42, %c0_43], %132 {strides = array<i32>} : memref<1x8x128xf32, #tpu.memory_space<vmem>>, vector<1x8x128xf32>,
    } else {
    }
    return
  }
  func.func @transform_0(%arg0: i32, %arg1: i32) -> (i32, i32, i32) {
    %c1_i32 = arith.constant 1 : i32
    %0 = arith.muli %arg0, %c1_i32 : i32
    %1 = arith.addi %0, %arg1 : i32
    %c0_i32 = arith.constant 0 : i32
    %c0_i32_0 = arith.constant 0 : i32
    %c0_i32_1 = arith.constant 0 : i32
    return %c0_i32, %1, %c0_i32_0 : i32, i32, i32
  }
  func.func @transform_1(%arg0: i32, %arg1: i32) -> (i32, i32, i32) {
    %c0_i32 = arith.constant 0 : i32
    %c0_i32_0 = arith.constant 0 : i32
    %c0_i32_1 = arith.constant 0 : i32
    return %arg0, %c0_i32, %c0_i32_0 : i32, i32, i32
  }
}

</mosaic_0001>

<llo_original>
// kernel: tpu_custom_call.1
$region0: #{tpu_custom_call.1}
  #allocation0 [shape = 'u32[]', space=smem, size = 0x4, offset = 0x4, fixed_abs, tag = 'smem constant byte address 0x4 - core index']
  #allocation1 [shape = 'u32[144,128]{1,0:T(1,128)}', space=vmem, size = 0x12000, scoped, tag = 'internal scratch']
  #allocation2 [shape = 'f32[8,128]{1,0:T(8,128)}', space=vmem, size = 0x1000, scoped, tag = 'scratch operand']
  %s0 = inlined_call_operand.hbm [shape: f32[3,8,128], index: 0, kind: input, shape index: {}]
  %s1 = inlined_call_operand.hbm [shape: f32[1,8,128], index: 1, kind: output, shape index: {}]
  %s2 = sld [smem:[#allocation0]]
  $region26: #{tpu_custom_call.1} parent=0
    _
  %s4 = ssub.s32 1, %s2
  %s5 = scalar_select 0, %s4, %s2
  $region1: #{tpu_custom_call.1} parent=0
    #allocation3 [shape = 'u8[12288]{0}', space=vmem, size = 0x3000, scoped, tag = 'input window, operand 0, single buffered']
    #allocation4 [shape = 's32[1]{0}', space=sflag, size = 0x4, scoped, tag = 'scoped memory for tpu_custom_call.1']
    #allocation5 [shape = 's32[1]{0}', space=sflag, size = 0x4, scoped, tag = 'scoped memory for tpu_custom_call.1']
    #allocation6 [shape = 'u8[4096]{0}', space=vmem, size = 0x1000, scoped, tag = 'output window, operand 0, single buffered']
    %6 = vsyncpa [#allocation4], 0
    %7 = vsyncpa [#allocation5], 0
    // Predicated region
    $region2: #{tpu_custom_call.1} parent=1 // pred_check
      _
    $region3: #{tpu_custom_call.1} parent=1 // pred_check_branch
      %9 = sbr.rel (0) target = $region5
    $region4: #{tpu_custom_call.1} parent=1 // pred_region
      %s10 = sadd.s32 0, 0
      %s12 = ssub.s32 384, 384
      %13 = vsyncadd [#allocation4], %s12
      %s14 = smul.addr %s10, 128
      %s15 = scalar_lea.hbm %s0, %s14
      %s16 = sshll.u32 [#allocation3], 4
      %s17 = int_to_ptr.vmem [resolvable:$true] %s16
      %22 = dma.hbm_to_vmem [thread:$0]  %s15, 384, %s17, [#allocation4], 128, 128, 8
    $region5: #{tpu_custom_call.1} parent=1 // pred_fallthru
      _
    // Predicated region
    $region6: #{tpu_custom_call.1} parent=1 // pred_check
      _
    $region7: #{tpu_custom_call.1} parent=1 // pred_check_branch
      %24 = sbr.rel (0) target = $region9
    $region8: #{tpu_custom_call.1} parent=1 // pred_region
      %25 = dma.done [#allocation4], 384
    $region9: #{tpu_custom_call.1} parent=1 // pred_fallthru
      _
    %s26 = sadd.s32 0, 0
    %p27 = scmp.eq.s32.totalorder 0, 0
    // Predicated region
    $region10: #{tpu_custom_call.1} parent=1 // pred_check
      %p28 = pneg %p27
    $region11: #{tpu_custom_call.1} parent=1 // pred_check_branch
      %30 = sbr.rel (%p28) target = $region13
    $region12: #{tpu_custom_call.1} parent=1 // pred_region
      %31 = vst [vmem:[#allocation2] sm:$0xff] 0.0
    $region13: #{tpu_custom_call.1} parent=1 // pred_fallthru
      _
    %v32 = vld [vmem:[#allocation3] sm:$0xff]
    %s33 = scalar_lea.vmem [#allocation3], 8
    %v34 = vld [vmem:[%s33] sm:$0xff]
    %s35 = scalar_lea.vmem [#allocation3], 16
    %v36 = vld [vmem:[%s35] sm:$0xff]
    %v37 = vsub.f32 %v32, 0.099999
    %v38 = vmul.f32 %v37, %v37
    %v39 = vsub.f32 %v34, 0.099999
    %v40 = vmul.f32 %v39, %v39
    %v41 = vadd.f32 %v38, %v40
    %v42 = vsub.f32 %v36, 0.099999
    %v43 = vmul.f32 %v42, %v42
    %v44 = vadd.f32 %v41, %v43
    %v45 = vsub.f32 %v32, 0.89999896
    %v46 = vmul.f32 %v45, %v45
    %v47 = vsub.f32 %v34, 0.89999896
    %v48 = vmul.f32 %v47, %v47
    %v49 = vadd.f32 %v46, %v48
    %v50 = vsub.f32 %v36, 0.89999896
    %v51 = vmul.f32 %v50, %v50
    %v52 = vadd.f32 %v49, %v51
    %v53 = vmin.f32 %v44, %v52
    %v54 = vsub.f32 %v32, 0.799999
    %v55 = vmul.f32 %v54, %v54
    %v56 = vadd.f32 %v55, %v40
    %v57 = vadd.f32 %v56, %v43
    %v58 = vmin.f32 %v53, %v57
    %v59 = vsub.f32 %v34, 0.799999
    %v60 = vmul.f32 %v59, %v59
    %v61 = vadd.f32 %v38, %v60
    %v62 = vadd.f32 %v61, %v43
    %v63 = vmin.f32 %v58, %v62
    %v64 = vsub.f32 %v36, 0.799999
    %v65 = vmul.f32 %v64, %v64
    %v66 = vadd.f32 %v41, %v65
    %v67 = vmin.f32 %v63, %v66
    %v68 = vsub.f32 %v32, 0.699999
    %v69 = vmul.f32 %v68, %v68
    %v70 = vsub.f32 %v34, 0.699999
    %v71 = vmul.f32 %v70, %v70
    %v72 = vadd.f32 %v69, %v71
    %v73 = vadd.f32 %v72, %v43
    %v74 = vmin.f32 %v67, %v73
    %v75 = vadd.f32 %v69, %v40
    %v76 = vsub.f32 %v36, 0.699999
    %v77 = vmul.f32 %v76, %v76
    %v78 = vadd.f32 %v75, %v77
    %v79 = vmin.f32 %v74, %v78
    %v80 = vadd.f32 %v38, %v71
    %v81 = vadd.f32 %v80, %v77
    %v82 = vmin.f32 %v79, %v81
    %v83 = vadd.f32 %v82, 1e-06
    %v84 = vrsqrt.pop %v83
    %v85 = vmul.f32 %v83, %v84
    %vm86 = vcmp.eq.f32.partialorder %v83, inf
    %v87 = vsel %vm86, %v83, %v85
    %vm88 = vcmp.eq.f32.partialorder %v83, 0.0
    %v89 = vand.u32 %v83, 2147483648
    %v90 = vsel %vm88, %v89, %v87
    %s91 = sadd.s32 0, 0
    %s92 = smul.u32 %s91, 1024
    %v93 = vlaneseq
    %v94 = vshrl.u32 %v93, 7
    %v95 = vlaneseq
    %v96 = vand.u32 %v95, 127
    %v97 = vmul.u32 %v94, 128
    %v98 = vstv %s92
    %v99 = vadd.s32 %v98, %v97
    %v100 = vadd.s32 %v99, %v96
    %vm101 = vcmp.lt.s32.totalorder %v100, 256
    %v102 = vsel %vm101, %v90, 0.0
    %v103 = vadd.f32 %v102, 0.0
    %v104 = vld [vmem:[#allocation2] sm:$0xff]
    %v105 = vadd.f32 %v104, %v103
    %106 = vst [vmem:[#allocation2] sm:$0xff] %v105
    // Predicated region
    $region14: #{tpu_custom_call.1} parent=1 // pred_check
      %p107 = pneg %p27
    $region15: #{tpu_custom_call.1} parent=1 // pred_check_branch
      %109 = sbr.rel (%p107) target = $region17
    $region16: #{tpu_custom_call.1} parent=1 // pred_region
      %v110 = vld [vmem:[#allocation2] sm:$0xff]
      %111 = vst [vmem:[#allocation6] sm:$0xff] %v110
    $region17: #{tpu_custom_call.1} parent=1 // pred_fallthru
      _
    // Predicated region
    $region18: #{tpu_custom_call.1} parent=1 // pred_check
      _
    $region19: #{tpu_custom_call.1} parent=1 // pred_check_branch
      %113 = sbr.rel (0) target = $region21
    $region20: #{tpu_custom_call.1} parent=1 // pred_region
      %s115 = ssub.s32 128, 128
      %116 = vsyncadd [#allocation5], %s115
      %s118 = sshll.u32 [#allocation6], 4
      %s119 = int_to_ptr.vmem [resolvable:$true] %s118
      %121 = dma.vmem_to_hbm [thread:$0]  %s119, 128, %s1, [#allocation5]
    $region21: #{tpu_custom_call.1} parent=1 // pred_fallthru
      _
    // Predicated region
    $region22: #{tpu_custom_call.1} parent=1 // pred_check
      _
    $region23: #{tpu_custom_call.1} parent=1 // pred_check_branch
      %123 = sbr.rel (0) target = $region25
    $region24: #{tpu_custom_call.1} parent=1 // pred_region
      %124 = dma.done [#allocation5], 128
    $region25: #{tpu_custom_call.1} parent=1 // pred_fallthru
      _
    %125 = vsyncpa [#allocation4], 1
    %126 = vsyncpa [#allocation5], 1

</llo_original>
